<compile_context>
chip_gen: v6e
topology: v6e:2x2x1
jax: 0.10.0
libtpu: 0.0.40
codegen_flags: <defaults>
</compile_context>

<pallas_src>
import functools

import jax
import jax.numpy as jnp
from jax.experimental import pallas as pl
from jax.experimental.pallas import tpu as pltpu


def _round_up(x: int, m: int) -> int:
    return (x + m - 1) // m * m


@functools.lru_cache(maxsize=None)
def _vmem_ceiling_bytes() -> int:
    """Per-core VMEM budget with headroom for compiler-internal scratch."""
    cap = None
    try:
        info = pltpu.get_tpu_info()
        cap = int(getattr(info, "vmem_capacity_bytes", 0)) or None
    except Exception:
        cap = None
    if cap is None:
        cap = 64 * 1024 * 1024  # conservative: v7x has 64 MiB per TensorCore
    # ~54 MiB on v7x, ~108 MiB on v5e/v6e.
    return int(cap * 0.85)


def _choose_tiles(M, K, N, tm, tn, tk, *, x_item, w_item, o_item):
    """Clamp tiles to the (padded) problem and fit them under the VMEM ceiling."""
    n128 = _round_up(N, 128)
    # Keep N tiles MXU-aligned (256-wide on v6e/v7x) when the problem allows.
    tn_cap = n128 if n128 <= 256 else _round_up(n128, 256)
    tm = _round_up(max(8, min(tm, _round_up(M, 8))), 8)
    tn = _round_up(max(128, min(tn, tn_cap)), 128)
    tk = _round_up(max(128, min(tk, _round_up(K, 128))), 128)

    ceiling = _vmem_ceiling_bytes()

    def footprint(tm_, tn_, tk_):
        return (2 * tm_ * tk_ * x_item        # x tiles (double-buffered)
                + 3 * tk_ * tn_ * w_item      # W tiles (up to triple-buffered)
                + 2 * 8 * tn_ * 4             # bias tile (sublane-padded), f32
                + 2 * tm_ * tn_ * o_item      # output tiles
                + tm_ * tn_ * 4               # f32 accumulator scratch
                + (6 << 20))                  # compiler / pipeline headroom

    while footprint(tm, tn, tk) > ceiling:
        if tk >= 1024:
            tk = _round_up(tk // 2, 128)
        elif tn > 256:
            tn = max(256, _round_up(tn // 2, 128))
        elif tm > 256:
            tm = max(256, _round_up(tm // 2, 8))
        elif tk > 256:
            tk = _round_up(tk // 2, 128)
        elif tn > 128:
            tn = _round_up(tn // 2, 128)
        elif tm > 8:
            tm = max(8, _round_up(tm // 2, 8))
        else:
            break
    return tm, tn, tk


# ----------------------------------------------------------------------------
# Kernels
# ----------------------------------------------------------------------------
def _linear_single_k_kernel(x_ref, w_ref, b_ref, o_ref, *, negate, compute_dtype):
    """Single K-step: direct store, no accumulator scratch."""
    x = x_ref[...]
    w = w_ref[...]
    if compute_dtype is not None:
        x = x.astype(compute_dtype)
        w = w.astype(compute_dtype)
    y = jnp.dot(x, w, preferred_element_type=jnp.float32)
    y = y + b_ref[...].astype(jnp.float32)
    if negate:
        y = -y
    o_ref[...] = y.astype(o_ref.dtype)


def _linear_acc_kernel(x_ref, w_ref, b_ref, o_ref, acc_ref, *, negate, compute_dtype):
    """Multi K-step: resident f32 accumulator, bias folded into the init."""
    k = pl.program_id(2)

    @pl.when(k == 0)
    def _init():
        acc_ref[...] = jnp.broadcast_to(
            b_ref[...].astype(jnp.float32), acc_ref.shape)

    x = x_ref[...]
    w = w_ref[...]
    if compute_dtype is not None:
        x = x.astype(compute_dtype)
        w = w.astype(compute_dtype)
    acc_ref[...] += jnp.dot(x, w, preferred_element_type=jnp.float32)

    @pl.when(k == pl.num_programs(2) - 1)
    def _finalize():
        y = acc_ref[...]
        if negate:
            y = -y
        o_ref[...] = y.astype(o_ref.dtype)


# ----------------------------------------------------------------------------
# pallas_call on pre-padded operands
# ----------------------------------------------------------------------------
def _linear_call(xp, wp, bp, *, tm, tn, tk, negate, compute_dtype, out_dtype):
    """xp: (Mp, Kp), wp: (Kp, Np), bp: (1, Np); all tile-aligned."""
    Mp, Kp = xp.shape
    Kp2, Np = wp.shape
    assert Kp == Kp2 and bp.shape == (1, Np)
    assert Mp % tm == 0 and Np % tn == 0 and Kp % tk == 0
    gm, gn, gk = Mp // tm, Np // tn, Kp // tk

    x_it = jnp.dtype(xp.dtype).itemsize
    w_it = jnp.dtype(wp.dtype).itemsize
    b_it = jnp.dtype(bp.dtype).itemsize
    o_it = jnp.dtype(out_dtype).itemsize

    def _estimate(w_bufs):
        return (2 * tm * tk * x_it
                + w_bufs * tk * tn * w_it
                + 2 * 8 * tn * b_it
                + 2 * tm * tn * o_it
                + (tm * tn * 4 if gk > 1 else 0))

    # Triple-buffer W for small-M (single M-tile), multi-k shapes: the kernel
    # is HBM-bound on W there and a third buffer hides DMA issue latency.
    w_bufs = 3 if (gk >= 2 and gm == 1 and hasattr(pl, "Buffered")) else 2
    if w_bufs == 3 and _estimate(3) + (6 << 20) > _vmem_ceiling_bytes():
        w_bufs = 2
    vmem_limit = min(_estimate(w_bufs) + (6 << 20), _vmem_ceiling_bytes())
    w_kwargs = {"pipeline_mode": pl.Buffered(3)} if w_bufs == 3 else {}

    if gk == 1:
        kernel = functools.partial(_linear_single_k_kernel,
                                   negate=negate, compute_dtype=compute_dtype)
        grid = (gm, gn)
        in_specs = [
            pl.BlockSpec((tm, tk), lambda i, j: (i, 0)),   # x tile
            pl.BlockSpec((tk, tn), lambda i, j: (0, j)),   # W tile
            pl.BlockSpec((1, tn), lambda i, j: (0, j)),    # bias tile
        ]
        out_spec = pl.BlockSpec((tm, tn), lambda i, j: (i, j))
        scratch = []
        dims = ("parallel", "parallel")
    else:
        kernel = functools.partial(_linear_acc_kernel,
                                   negate=negate, compute_dtype=compute_dtype)
        grid = (gm, gn, gk)
        in_specs = [
            pl.BlockSpec((tm, tk), lambda i, j, k: (i, k)),              # x tile
            pl.BlockSpec((tk, tn), lambda i, j, k: (k, j), **w_kwargs),  # W tile
            pl.BlockSpec((1, tn), lambda i, j, k: (0, j)),               # bias
        ]
        out_spec = pl.BlockSpec((tm, tn), lambda i, j, k: (i, j))
        scratch = [pltpu.VMEM((tm, tn), jnp.float32)]
        dims = ("parallel", "parallel", "arbitrary")

    return pl.pallas_call(
        kernel,
        out_shape=jax.ShapeDtypeStruct((Mp, Np), out_dtype),
        grid_spec=pltpu.PrefetchScalarGridSpec(
            num_scalar_prefetch=0,
            grid=grid,
            in_specs=in_specs,
            out_specs=out_spec,
            scratch_shapes=scratch,
        ),
        compiler_params=pltpu.CompilerParams(
            dimension_semantics=dims,
            vmem_limit_bytes=int(vmem_limit),
        ),
    )(xp, wp, bp)


# ----------------------------------------------------------------------------
# Module-style wrapper (hot path): parameters pre-negated / pre-padded once.
# ----------------------------------------------------------------------------
class LinePallas:
    """Pallas-TPU `Line`: forward(x) = -(x @ W + b).

    W is stored as (in_features, out_features). The static parameters are
    pre-negated and pre-padded ONCE at construction so every forward only
    (possibly) pads x and needs no epilogue negate.
    """

    def __init__(self, w, b, *, tm=512, tn=512, tk=2048,
                 compute_dtype=None, out_dtype=None):
        K, N = w.shape
        assert b.shape == (N,), b.shape
        self.input_dim, self.output_dim = K, N
        self.compute_dtype = compute_dtype
        self.out_dtype = out_dtype

        w_store_dtype = compute_dtype if compute_dtype is not None else w.dtype
        self.tm, self.tn, self.tk = _choose_tiles(
            tm, K, N, tm, tn, tk,
            x_item=4,  # assume f32 activations for the fit (conservative)
            w_item=jnp.dtype(w_store_dtype).itemsize,
            o_item=4)
        self.Kp = _round_up(K, self.tk)
        self.Np = _round_up(N, self.tn)

        # One-time hoist: pre-negate and pad the static Linear parameters.
        wn = (-w).astype(w_store_dtype)
        bn = -b
        if self.Kp != K or self.Np != N:
            wn = jnp.pad(wn, ((0, self.Kp - K), (0, self.Np - N)))
        if self.Np != N:
            bn = jnp.pad(bn, (0, self.Np - N))
        self.w_neg = wn
        self.b_neg = bn.reshape(1, self.Np)

    def __call__(self, x):
        M, K = x.shape
        assert K == self.input_dim, (K, self.input_dim)
        out_dtype = self.out_dtype if self.out_dtype is not None else x.dtype

        tm = min(self.tm, _round_up(M, 8))
        Mp = _round_up(M, tm)
        xp = x
        if Mp != M or self.Kp != K:
            xp = jnp.pad(x, ((0, Mp - M), (0, self.Kp - K)))

        out = _linear_call(xp, self.w_neg, self.b_neg,
                           tm=tm, tn=self.tn, tk=self.tk,
                           negate=False,              # params already negated
                           compute_dtype=self.compute_dtype,
                           out_dtype=out_dtype)
        if Mp != M or self.Np != self.output_dim:
            out = out[:M, :self.output_dim]
        return out


# ----------------------------------------------------------------------------
# Functional convenience wrapper (pads per call; negation in the epilogue so
# we never take an extra KxN HBM pass to negate W in the wrapper).
# ----------------------------------------------------------------------------
def neg_linear_pallas(x, w, b, *, tm=512, tn=512, tk=2048,
                      compute_dtype=None, out_dtype=None):
    """Compute -(x @ w + b).  x: (M, K), w: (K, N), b: (N,)."""
    M, K = x.shape
    K2, N = w.shape
    assert K == K2, (K, K2)
    assert b.shape == (N,), b.shape
    out_dtype = out_dtype if out_dtype is not None else x.dtype
    w_dtype = compute_dtype if compute_dtype is not None else w.dtype

    tm, tn, tk = _choose_tiles(M, K, N, tm, tn, tk,
                               x_item=jnp.dtype(x.dtype).itemsize,
                               w_item=jnp.dtype(w_dtype).itemsize,
                               o_item=jnp.dtype(out_dtype).itemsize)
    Mp, Kp, Np = _round_up(M, tm), _round_up(K, tk), _round_up(N, tn)

    xp = x if (Mp == M and Kp == K) else jnp.pad(x, ((0, Mp - M), (0, Kp - K)))
    wp = w if (Kp == K and Np == N) else jnp.pad(w, ((0, Kp - K), (0, Np - N)))
    if compute_dtype is not None:
        wp = wp.astype(compute_dtype)
    bp = b if Np == N else jnp.pad(b, (0, Np - N))
    bp = bp.reshape(1, Np)

    out = _linear_call(xp, wp, bp, tm=tm, tn=tn, tk=tk,
                       negate=True, compute_dtype=compute_dtype,
                       out_dtype=out_dtype)
    if Mp != M or Np != N:
        out = out[:M, :N]
    return out


def init_line_params(key, input_dim, output_dim):
    """PyTorch-style U(-1/sqrt(fan_in), 1/sqrt(fan_in)) init for nn.Linear."""
    kw, kb = jax.random.split(key)
    bound = 1.0 / jnp.sqrt(jnp.float32(input_dim))
    w = jax.random.uniform(kw, (input_dim, output_dim), jnp.float32, -bound, bound)
    b = jax.random.uniform(kb, (output_dim,), jnp.float32, -bound, bound)
    return w, b


def line_reference(x, w, b):
    return -(x @ w + b)


if __name__ == "__main__":
    key = jax.random.PRNGKey(0)

    # 1) Module-shaped test: Line(input_dim=16, output_dim=8), batch=8.
    #    Class path: pre-negated/pre-padded params, single-k direct-store kernel.
    batch, input_dim, output_dim = 8, 16, 8
    kx, kp = jax.random.split(key)
    x = jax.random.normal(kx, (batch, input_dim), jnp.float32)
    w, b = init_line_params(kp, input_dim, output_dim)
    line = LinePallas(w, b)
    out = jax.block_until_ready(line(x))
    ref = line_reference(x, w, b)
    assert out.shape == (batch, output_dim)
    assert jnp.allclose(out, ref, atol=1e-5, rtol=1e-5)

    # 2) Generic path: padding + multi-tile (M, N, K) grid, f32 accumulator,
    #    in-kernel negation, output slice.
    M2, K2, N2 = 160, 200, 250
    k1, k2, k3 = jax.random.split(kp, 3)
    x2 = jax.random.normal(k1, (M2, K2), jnp.float32)
    w2 = jax.random.normal(k2, (K2, N2), jnp.float32) * 0.05
    b2 = jax.random.normal(k3, (N2,), jnp.float32)
    out2 = jax.block_until_ready(
        neg_linear_pallas(x2, w2, b2, tm=128, tn=128, tk=128))
    ref2 = line_reference(x2, w2, b2)
    assert out2.shape == (M2, N2)
    assert jnp.allclose(out2, ref2, atol=1e-4, rtol=1e-4)

    # 3) Small-M / multi-k shape via the class: exercises the bias-folded
    #    accumulator kernel and the triple-buffered (pl.Buffered(3)) W path.
    M3, K3, N3 = 32, 512, 256
    k4, k5, k6 = jax.random.split(k3, 3)
    x3 = jax.random.normal(k4, (M3, K3), jnp.float32) * 0.1
    w3 = jax.random.normal(k5, (K3, N3), jnp.float32) * 0.05
    b3 = jax.random.normal(k6, (N3,), jnp.float32)
    line3 = LinePallas(w3, b3, tk=128)
    out3 = jax.block_until_ready(line3(x3))
    ref3 = -(jnp.dot(x3, w3, precision=jax.lax.Precision.HIGHEST) + b3)
    assert out3.shape == (M3, N3)
    assert jnp.allclose(out3, ref3, atol=1e-3, rtol=1e-3)

    print("KERNEL_OK")
</pallas_src>

<mosaic_0001>
module attributes {stable_mosaic.version = 11 : i64} {
  func.func @_linear_single_k_kernel(%arg0: i32, %arg1: i32, %arg2: memref<8x128xf32, #tpu.memory_space<vmem>>, %arg3: memref<128x128xf32, #tpu.memory_space<vmem>>, %arg4: memref<1x128xf32, #tpu.memory_space<vmem>>, %arg5: memref<8x128xf32, #tpu.memory_space<vmem>>) attributes {dimension_semantics = [#tpu.dimension_semantics<parallel>, #tpu.dimension_semantics<parallel>], iteration_bounds = array<i64: 1, 1>, scalar_prefetch = 0 : i64, scratch_operands = 0 : i64, tpu.core_type = #tpu.core_type<tc>, window_params = [{transform_indices = @transform_0, window_bounds = array<i64: 8, 128>}, {transform_indices = @transform_1, window_bounds = array<i64: 128, 128>}, {transform_indices = @transform_2, window_bounds = array<i64: 1, 128>}, {transform_indices = @transform_3, window_bounds = array<i64: 8, 128>}]} {
    %c0 = arith.constant 0 : index
    %c0_0 = arith.constant 0 : index
    %0 = vector.load %arg2[%c0, %c0_0] : memref<8x128xf32, #tpu.memory_space<vmem>>, vector<8x128xf32>
    %c0_1 = arith.constant 0 : index
    %c0_2 = arith.constant 0 : index
    %1 = vector.load %arg3[%c0_1, %c0_2] : memref<128x128xf32, #tpu.memory_space<vmem>>, vector<128x128xf32>
    %cst = arith.constant dense<0.000000e+00> : vector<8x128xf32>
    %2 = tpu.matmul %0, %1, %cst {dimension_numbers = #tpu.dot_dimension_numbers<[1], [0], [0], [1], [0, 0, 1, 1], [], []>} : vector<8x128xf32>, vector<128x128xf32>, vector<8x128xf32> -> vector<8x128xf32>
    %c0_3 = arith.constant 0 : index
    %c0_4 = arith.constant 0 : index
    %3 = vector.load %arg4[%c0_3, %c0_4] : memref<1x128xf32, #tpu.memory_space<vmem>>, vector<1x128xf32>
    %4 = vector.broadcast %3 : vector<1x128xf32> to vector<8x128xf32>
    %5 = arith.addf %2, %4 : vector<8x128xf32>
    %c0_5 = arith.constant 0 : index
    %c0_6 = arith.constant 0 : index
    %6 = vector.load %arg5[%c0_5, %c0_6] : memref<8x128xf32, #tpu.memory_space<vmem>>, vector<8x128xf32>
    tpu.vector_store %arg5[%c0_5, %c0_6], %5 {strides = array<i32>} : memref<8x128xf32, #tpu.memory_space<vmem>>, vector<8x128xf32>,
    return
  }
  func.func @transform_0(%arg0: i32, %arg1: i32) -> (i32, i32) {
    %c0_i32 = arith.constant 0 : i32
    %c0_i32_0 = arith.constant 0 : i32
    return %arg0, %c0_i32 : i32, i32
  }
  func.func @transform_1(%arg0: i32, %arg1: i32) -> (i32, i32) {
    %c0_i32 = arith.constant 0 : i32
    %c0_i32_0 = arith.constant 0 : i32
    return %c0_i32, %arg1 : i32, i32
  }
  func.func @transform_2(%arg0: i32, %arg1: i32) -> (i32, i32) {
    %c0_i32 = arith.constant 0 : i32
    %c0_i32_0 = arith.constant 0 : i32
    return %c0_i32, %arg1 : i32, i32
  }
  func.func @transform_3(%arg0: i32, %arg1: i32) -> (i32, i32) {
    %c0_i32 = arith.constant 0 : i32
    return %arg0, %arg1 : i32, i32
  }
}

</mosaic_0001>

<llo_original>
// kernel: tpu_custom_call.1
$region0: #{tpu_custom_call.1}
  #allocation0 [shape = 'u32[]', space=smem, size = 0x4, offset = 0x4, fixed_abs, tag = 'smem constant byte address 0x4 - core index']
  #allocation1 [shape = 'u32[144,128]{1,0:T(1,128)}', space=vmem, size = 0x12000, scoped, tag = 'internal scratch']
  %s0 = inlined_call_operand.hbm [shape: f32[8,128], index: 0, kind: input, shape index: {}]
  %s1 = inlined_call_operand.hbm [shape: f32[128,128], index: 1, kind: input, shape index: {}]
  %s2 = inlined_call_operand.vmem [shape: f32[1,128], index: 2, kind: input, shape index: {}]
  %s3 = inlined_call_operand.hbm [shape: f32[8,128], index: 3, kind: output, shape index: {}]
  %s4 = sld [smem:[#allocation0]]
  $region30: #{tpu_custom_call.1} parent=0
    _
  %s6 = ssub.s32 1, %s4
  %s7 = scalar_select 0, %s6, %s4
  $region1: #{tpu_custom_call.1} parent=0
    #allocation2 [shape = 'u8[4096]{0}', space=vmem, size = 0x1000, scoped, tag = 'input window, operand 0, single buffered']
    #allocation3 [shape = 's32[1]{0}', space=sflag, size = 0x4, scoped, tag = 'scoped memory for tpu_custom_call.1']
    #allocation4 [shape = 's32[1]{0}', space=sflag, size = 0x4, scoped, tag = 'scoped memory for tpu_custom_call.1']
    #allocation5 [shape = 'u8[65536]{0}', space=vmem, size = 0x10000, scoped, tag = 'input window, operand 1, single buffered']
    #allocation6 [shape = 's32[1]{0}', space=sflag, size = 0x4, scoped, tag = 'scoped memory for tpu_custom_call.1']
    #allocation7 [shape = 'u8[4096]{0}', space=vmem, size = 0x1000, scoped, tag = 'output window, operand 0, single buffered']
    %8 = vsyncpa [#allocation3], 0
    %9 = vsyncpa [#allocation6], 0
    %10 = vsyncpa [#allocation4], 0
    // Predicated region
    $region2: #{tpu_custom_call.1} parent=1 // pred_check
      _
    $region3: #{tpu_custom_call.1} parent=1 // pred_check_branch
      %12 = sbr.rel (0) target = $region5
    $region4: #{tpu_custom_call.1} parent=1 // pred_region
      %s14 = ssub.s32 128, 128
      %15 = vsyncadd [#allocation3], %s14
      %s17 = sshll.u32 [#allocation2], 4
      %s18 = int_to_ptr.vmem [resolvable:$true] %s17
      %20 = dma.hbm_to_vmem [thread:$0]  %s0, 128, %s18, [#allocation3]
    $region5: #{tpu_custom_call.1} parent=1 // pred_fallthru
      _
    // Predicated region
    $region6: #{tpu_custom_call.1} parent=1 // pred_check
      _
    $region7: #{tpu_custom_call.1} parent=1 // pred_check_branch
      %22 = sbr.rel (0) target = $region9
    $region8: #{tpu_custom_call.1} parent=1 // pred_region
      %s24 = ssub.s32 2048, 2048
      %25 = vsyncadd [#allocation6], %s24
      %s26 = sshll.u32 [#allocation5], 4
      %s27 = int_to_ptr.vmem [resolvable:$true] %s26
      %32 = dma.hbm_to_vmem [thread:$0]  %s1, 2048, %s27, [#allocation6], 128, 128, 8
    $region9: #{tpu_custom_call.1} parent=1 // pred_fallthru
      _
    // Predicated region
    $region10: #{tpu_custom_call.1} parent=1 // pred_check
      _
    $region11: #{tpu_custom_call.1} parent=1 // pred_check_branch
      %34 = sbr.rel (0) target = $region13
    $region12: #{tpu_custom_call.1} parent=1 // pred_region
      _
    $region13: #{tpu_custom_call.1} parent=1 // pred_fallthru
      _
    // Predicated region
    $region14: #{tpu_custom_call.1} parent=1 // pred_check
      _
    $region15: #{tpu_custom_call.1} parent=1 // pred_check_branch
      %36 = sbr.rel (0) target = $region17
    $region16: #{tpu_custom_call.1} parent=1 // pred_region
      %37 = dma.done [#allocation3], 128
    $region17: #{tpu_custom_call.1} parent=1 // pred_fallthru
      _
    // Predicated region
    $region18: #{tpu_custom_call.1} parent=1 // pred_check
      _
    $region19: #{tpu_custom_call.1} parent=1 // pred_check_branch
      %39 = sbr.rel (0) target = $region21
    $region20: #{tpu_custom_call.1} parent=1 // pred_region
      %40 = dma.done [#allocation6], 2048
    $region21: #{tpu_custom_call.1} parent=1 // pred_fallthru
      _
    %v41 = vld [vmem:[#allocation2] sm:$0xff]
    %v42 = vld [vmem:[#allocation5] sm:$0xff]
    %v43 = vld [vmem:[#allocation5 + $0x8] sm:$0xff]
    %v44 = vld [vmem:[#allocation5 + $0x10] sm:$0xff]
    %v45 = vld [vmem:[#allocation5 + $0x18] sm:$0xff]
    %v46 = vld [vmem:[#allocation5 + $0x20] sm:$0xff]
    %v47 = vld [vmem:[#allocation5 + $0x28] sm:$0xff]
    %v48 = vld [vmem:[#allocation5 + $0x30] sm:$0xff]
    %v49 = vld [vmem:[#allocation5 + $0x38] sm:$0xff]
    %v50 = vld [vmem:[#allocation5 + $0x40] sm:$0xff]
    %v51 = vld [vmem:[#allocation5 + $0x48] sm:$0xff]
    %v52 = vld [vmem:[#allocation5 + $0x50] sm:$0xff]
    %v53 = vld [vmem:[#allocation5 + $0x58] sm:$0xff]
    %v54 = vld [vmem:[#allocation5 + $0x60] sm:$0xff]
    %v55 = vld [vmem:[#allocation5 + $0x68] sm:$0xff]
    %v56 = vld [vmem:[#allocation5 + $0x70] sm:$0xff]
    %v57 = vld [vmem:[#allocation5 + $0x78] sm:$0xff]
    %v58 = vld [vmem:[%s2] sm:$0x1]
    %v60 = vlaneseq
    %v61 = vshrl.u32 %v60, 7
    %v62 = vsub.s32 0, %v61
    %v63 = vrot.slane %v58, %v62
    %65 = vmatprep.subr.mxu0 0.0
    %66 = vmatpush1.msra.mxu0 %v57
    %67 = vmatprep.subr.mxu0 0.0
    %68 = vmatpush1.msra.mxu0 %v56
    %69 = vmatprep.subr.mxu0 0.0
    %70 = vmatpush1.msra.mxu0 %v55
    %71 = vmatprep.subr.mxu0 0.0
    %72 = vmatpush1.msra.mxu0 %v54
    %73 = vmatprep.subr.mxu0 0.0
    %74 = vmatpush1.msra.mxu0 %v53
    %75 = vmatprep.subr.mxu0 0.0
    %76 = vmatpush1.msra.mxu0 %v52
    %77 = vmatprep.subr.mxu0 0.0
    %78 = vmatpush1.msra.mxu0 %v51
    %79 = vmatprep.subr.mxu0 0.0
    %80 = vmatpush1.msra.mxu0 %v50
    %81 = vmatprep.subr.mxu0 0.0
    %82 = vmatpush1.msra.mxu0 %v49
    %83 = vmatprep.subr.mxu0 0.0
    %84 = vmatpush1.msra.mxu0 %v48
    %85 = vmatprep.subr.mxu0 0.0
    %86 = vmatpush1.msra.mxu0 %v47
    %87 = vmatprep.subr.mxu0 0.0
    %88 = vmatpush1.msra.mxu0 %v46
    %89 = vmatprep.subr.mxu0 0.0
    %90 = vmatpush1.msra.mxu0 %v45
    %91 = vmatprep.subr.mxu0 0.0
    %92 = vmatpush1.msra.mxu0 %v44
    %93 = vmatprep.subr.mxu0 0.0
    %94 = vmatpush1.msra.mxu0 %v43
    %95 = vmatprep.subr.mxu0 0.0
    %96 = vmatpush1.msra.mxu0 %v42
    %97 = vmatprep.subr.mxu0 0.0
    %98 = vmatpush2.msra.mxu0 0.0
    %99 = vmatprep.subr.mxu0 0.0
    %100 = vmatpush2.msra.mxu0 0.0
    %101 = vmatprep.subr.mxu0 0.0
    %102 = vmatpush2.msra.mxu0 0.0
    %103 = vmatprep.subr.mxu0 0.0
    %104 = vmatpush2.msra.mxu0 0.0
    %105 = vmatprep.subr.mxu0 0.0
    %106 = vmatpush2.msra.mxu0 0.0
    %107 = vmatprep.subr.mxu0 0.0
    %108 = vmatpush2.msra.mxu0 0.0
    %109 = vmatprep.subr.mxu0 0.0
    %110 = vmatpush2.msra.mxu0 0.0
    %111 = vmatprep.subr.mxu0 0.0
    %112 = vmatpush2.msra.mxu0 0.0
    %113 = vmatprep.subr.mxu0 0.0
    %114 = vmatpush2.msra.mxu0 0.0
    %115 = vmatprep.subr.mxu0 0.0
    %116 = vmatpush2.msra.mxu0 0.0
    %117 = vmatprep.subr.mxu0 0.0
    %118 = vmatpush2.msra.mxu0 0.0
    %119 = vmatprep.subr.mxu0 0.0
    %120 = vmatpush2.msra.mxu0 0.0
    %121 = vmatprep.subr.mxu0 0.0
    %122 = vmatpush2.msra.mxu0 0.0
    %123 = vmatprep.subr.mxu0 0.0
    %124 = vmatpush2.msra.mxu0 0.0
    %125 = vmatprep.subr.mxu0 0.0
    %126 = vmatpush2.msra.mxu0 0.0
    %127 = vmatprep.subr.mxu0 0.0
    %128 = vmatpush2.msra.mxu0 0.0
    %129 = vmatprep.mubr.f32.mxu0 0.0
    %130 = vmatmul.mubr.f32.gmra.mxu0 %v41
    %v131 = vpop.f32.mrf.mxu0
    %v132 = vadd.f32 %v63, %v131
    %v133 = vpop.f32.mrf.mxu0
    %134 = vdwg.mxu0
    %135 = vst [vmem:[#allocation7] sm:$0xff] %v132
    // Predicated region
    $region22: #{tpu_custom_call.1} parent=1 // pred_check
      _
    $region23: #{tpu_custom_call.1} parent=1 // pred_check_branch
      %137 = sbr.rel (0) target = $region25
    $region24: #{tpu_custom_call.1} parent=1 // pred_region
      %s139 = ssub.s32 128, 128
      %140 = vsyncadd [#allocation4], %s139
      %s142 = sshll.u32 [#allocation7], 4
      %s143 = int_to_ptr.vmem [resolvable:$true] %s142
      %145 = dma.vmem_to_hbm [thread:$0]  %s143, 128, %s3, [#allocation4]
    $region25: #{tpu_custom_call.1} parent=1 // pred_fallthru
      _
    // Predicated region
    $region26: #{tpu_custom_call.1} parent=1 // pred_check
      _
    $region27: #{tpu_custom_call.1} parent=1 // pred_check_branch
      %147 = sbr.rel (0) target = $region29
    $region28: #{tpu_custom_call.1} parent=1 // pred_region
      %148 = dma.done [#allocation4], 128
    $region29: #{tpu_custom_call.1} parent=1 // pred_fallthru
      _
    %149 = vsyncpa [#allocation3], 1
    %150 = vsyncpa [#allocation6], 1
    %151 = vsyncpa [#allocation4], 1

</llo_original>
